<compile_context>
chip_gen: v6e
topology: v6e:2x2x1
jax: 0.10.0
libtpu: 0.0.40
codegen_flags: <defaults>
</compile_context>

<pallas_src>
import jax
import jax.numpy as jnp
import numpy as np
from jax.experimental import pallas as pl
from jax.experimental.pallas import tpu as pltpu


# ----------------------------------------------------------------------------
# Constants / generation-aware tile selection
# ----------------------------------------------------------------------------

_LANE_WIDTH = 128
_MAX_LANE_DIM = 8192              # widest lane-dense column we flatten to
_DEFAULT_TILE_BYTES = 2 << 20     # 2 MiB blocks: 1 in + 1 out, double-buffered
                                  # = 8 MiB pipeline VMEM (safe on every gen)
_MIN_PALLAS_BYTES = 1 << 20       # below this, kernel launch overhead dominates

_cached_tile_bytes = None


def _select_target_tile_bytes():
    """2 MiB everywhere (safe under v5e's 16 MiB scoped-VMEM default); bump to
    4 MiB only when v6e/v7x is positively identified (32 MiB scoped default)."""
    global _cached_tile_bytes
    if _cached_tile_bytes is not None:
        return _cached_tile_bytes
    tile = _DEFAULT_TILE_BYTES
    try:
        info = pltpu.get_tpu_info()
        name = (str(getattr(info, "chip_version", "")) + " " + str(info)).lower()
        if any(t in name for t in ("v6", "6e", "trillium", "v7", "7x")):
            tile = 4 << 20
    except Exception:
        pass  # unknown chip -> keep the conservative 2 MiB default
    _cached_tile_bytes = tile
    return tile


# ----------------------------------------------------------------------------
# Pallas copy kernel (only used on the explicit materialize path)
# ----------------------------------------------------------------------------

def _copy_kernel(x_ref, o_ref):
    # Pure mem-bound pass-through of the current VMEM tile.
    o_ref[...] = x_ref[...]


def _flatten_lane_dense(x):
    """Reshape (metadata-only for a contiguous array) into a 2D slab whose
    column count is a 128-multiple <= 8192 and whose row count is >= 8 when
    possible.  Returns None when no 128-multiple factorization exists."""
    n = x.size
    if n % _LANE_WIDTH != 0:
        return None
    max_c = min(_MAX_LANE_DIM, n)
    fallback_c = None
    for m in range(max_c // _LANE_WIDTH, 0, -1):
        cand = m * _LANE_WIDTH
        if n % cand != 0:
            continue
        if fallback_c is None:
            fallback_c = cand
        if n // cand >= 8:
            return x.reshape(n // cand, cand)
    if fallback_c is not None:
        return x.reshape(n // fallback_c, fallback_c)
    return None


def _pallas_copy_2d(x2d, target_tile_bytes):
    """Row-tiled identity copy of a lane-dense 2D slab (no input aliasing)."""
    R, C = x2d.shape
    itemsize = jnp.dtype(x2d.dtype).itemsize
    target_elems = max(1, target_tile_bytes // itemsize)

    # Sublane packing: 8 rows/vreg for 32-bit, 16 for bf16/fp16, 32 for int8/fp8.
    sub = max(8, 32 // itemsize)

    # Column tile = full lane extent (C is a 128-multiple <= 8192).
    tc = C

    # Row tile: as many packed-row groups as fit the byte budget (tr*tc <= target).
    tr = max(sub, (target_elems // tc // sub) * sub)
    if tr > R:
        tr = R  # full extent (allowed even if R is not a multiple of 8)

    # Guarantee >= 2 (aim ~4) grid blocks so v7x's two TensorCores both get
    # work and the pipeline actually overlaps DMA with writeback.
    if pl.cdiv(R, tr) < 2 and R > sub:
        tr_split = max(sub, (pl.cdiv(R, 4) // sub) * sub)
        if tr_split < R:
            tr = tr_split

    nbytes = R * C * itemsize
    grid = (pl.cdiv(R, tr),)

    return pl.pallas_call(
        _copy_kernel,
        out_shape=jax.ShapeDtypeStruct((R, C), x2d.dtype),
        grid_spec=pltpu.PrefetchScalarGridSpec(
            num_scalar_prefetch=0,
            grid=grid,
            in_specs=[pl.BlockSpec((tr, tc), lambda i: (i, 0))],
            out_specs=pl.BlockSpec((tr, tc), lambda i: (i, 0)),
        ),
        compiler_params=pltpu.CompilerParams(
            dimension_semantics=("parallel",)),
        cost_estimate=pl.CostEstimate(
            flops=0, transcendentals=0, bytes_accessed=2 * nbytes),
    )(x2d)


def _xla_copy(x):
    """Fresh-buffer copy via XLA (tiny tensors / shapes the lane-dense
    flattener cannot factor)."""
    return jnp.copy(x)


def _pallas_copy(x):
    """Materialized identity (fresh buffer) of an arbitrarily-shaped array."""
    x = jnp.asarray(x)
    if x.ndim == 0 or x.size == 0 or x.nbytes < _MIN_PALLAS_BYTES:
        return _xla_copy(x)
    x2d = _flatten_lane_dense(x)
    if x2d is None or x2d.shape[0] < 8:
        return _xla_copy(x)
    y2d = _pallas_copy_2d(x2d, _select_target_tile_bytes())
    return y2d.reshape(x.shape)


def pallas_identity(x, *, materialize=False):
    """Identity.  Default: pure pass-through (zero HBM traffic).
    materialize=True: always returns a fresh buffer (Pallas copy when the
    tensor is large and lane-dense, XLA copy otherwise)."""
    if not materialize:
        return x
    return _pallas_copy(x)


# ----------------------------------------------------------------------------
# Module wrapper (matches the PyTorch Identity forward semantics)
# ----------------------------------------------------------------------------

class Identity:
    """JAX/Pallas port of the PyTorch Identity module.

    forward(*params):
        if retparam is not None: return params[retparam]
        return params
    """

    def __init__(self, retparam=None, materialize=False):
        self.retparam = retparam
        self.materialize = materialize

    def __call__(self, *params):
        if self.retparam is not None:
            p = params[self.retparam]
            # Non-returned params are never touched.
            return _pallas_copy(p) if self.materialize else p
        if self.materialize:
            # Consistent materialization for every param (Pallas for big,
            # XLA copy for small / non-flattenable).
            return tuple(_pallas_copy(p) for p in params)
        return params  # zero-copy pass-through


if __name__ == "__main__":
    key = jax.random.PRNGKey(0)
    k1, k2, k3 = jax.random.split(key, 3)
    # Small NCHW-style input plus a second arbitrary input to exercise *params.
    x = jax.random.normal(k1, (2, 4, 16, 16), dtype=jnp.float32)
    y = jax.random.normal(k2, (2, 8, 32), dtype=jnp.float32)
    # 2 MiB array to exercise the Pallas copy kernel on the materialize path.
    big = jax.random.normal(k3, (512, 1024), dtype=jnp.float32)

    x_np, y_np, big_np = np.asarray(x), np.asarray(y), np.asarray(big)

    # Case 1: retparam=None -> tuple of all inputs, unchanged (zero-copy).
    mod_all = Identity(retparam=None)
    out_all = mod_all(x, y)
    jax.block_until_ready(out_all)
    assert isinstance(out_all, tuple) and len(out_all) == 2
    assert out_all[0].shape == x.shape and out_all[0].dtype == x.dtype
    assert out_all[1].shape == y.shape and out_all[1].dtype == y.dtype
    assert np.array_equal(np.asarray(out_all[0]), x_np)
    assert np.array_equal(np.asarray(out_all[1]), y_np)

    # Case 2: retparam=0 -> returns params[0] exactly (other params untouched).
    mod_0 = Identity(retparam=0)
    out_0 = jax.block_until_ready(mod_0(x, y))
    assert out_0.shape == x.shape and np.array_equal(np.asarray(out_0), x_np)

    # Case 3: explicit materialized identity via the Pallas copy kernel
    # (fresh, un-aliased buffer; lane-dense row-tiled copy with >=2 blocks).
    z = jax.block_until_ready(pallas_identity(big, materialize=True))
    assert z.shape == big.shape and z.dtype == big.dtype
    assert np.array_equal(np.asarray(z), big_np)

    # Case 4: small tensors are still materialized (XLA copy fallback), so
    # materialization semantics are consistent across params.
    w = jax.block_until_ready(pallas_identity(x, materialize=True))
    assert w.shape == x.shape and np.array_equal(np.asarray(w), x_np)

    print("KERNEL_OK")
</pallas_src>

<mosaic_0001>
module attributes {stable_mosaic.version = 11 : i64} {
  func.func @_copy_kernel(%arg0: i32, %arg1: memref<16x8192xf32, #tpu.memory_space<vmem>>, %arg2: memref<16x8192xf32, #tpu.memory_space<vmem>>) attributes {dimension_semantics = [#tpu.dimension_semantics<parallel>], iteration_bounds = array<i64: 4>, scalar_prefetch = 0 : i64, scratch_operands = 0 : i64, tpu.core_type = #tpu.core_type<tc>, window_params = [{transform_indices = @transform_0, window_bounds = array<i64: 16, 8192>}, {transform_indices = @transform_1, window_bounds = array<i64: 16, 8192>}]} {
    %c0 = arith.constant 0 : index
    %c0_0 = arith.constant 0 : index
    %0 = vector.load %arg1[%c0, %c0_0] : memref<16x8192xf32, #tpu.memory_space<vmem>>, vector<16x8192xf32>
    %c0_1 = arith.constant 0 : index
    %c0_2 = arith.constant 0 : index
    %1 = vector.load %arg2[%c0_1, %c0_2] : memref<16x8192xf32, #tpu.memory_space<vmem>>, vector<16x8192xf32>
    tpu.vector_store %arg2[%c0_1, %c0_2], %0 {strides = array<i32>} : memref<16x8192xf32, #tpu.memory_space<vmem>>, vector<16x8192xf32>,
    return
  }
  func.func @transform_0(%arg0: i32) -> (i32, i32) {
    %c0_i32 = arith.constant 0 : i32
    %c0_i32_0 = arith.constant 0 : i32
    return %arg0, %c0_i32 : i32, i32
  }
  func.func @transform_1(%arg0: i32) -> (i32, i32) {
    %c0_i32 = arith.constant 0 : i32
    %c0_i32_0 = arith.constant 0 : i32
    return %arg0, %c0_i32 : i32, i32
  }
}

</mosaic_0001>

<llo_original>
// kernel: tpu_custom_call.1
$region0: #{tpu_custom_call.1}
  #allocation0 [shape = 'u32[]', space=smem, size = 0x4, offset = 0x4, fixed_abs, tag = 'smem constant byte address 0x4 - core index']
  #allocation1 [shape = 'u32[144,128]{1,0:T(1,128)}', space=vmem, size = 0x12000, scoped, tag = 'internal scratch']
  %s0 = inlined_call_operand.hbm [shape: f32[64,8192], index: 0, kind: input, shape index: {}]
  %s1 = inlined_call_operand.hbm [shape: f32[64,8192], index: 1, kind: output, shape index: {}]
  %s2 = sld [smem:[#allocation0]]
  $region41: #{tpu_custom_call.1} parent=0
    _
  %s4 = ssub.s32 1, %s2
  %s5 = scalar_select 0, %s4, %s2
  $region1: #{tpu_custom_call.1} parent=0
    #allocation2 [shape = 'u8[1048576]{0}', space=vmem, size = 0x100000, scoped, tag = 'input window, operand 0']
    #allocation3 [shape = 's32[2]{0}', space=sflag, size = 0x8, scoped, tag = 'scoped memory for tpu_custom_call.1']
    #allocation4 [shape = 's32[2]{0}', space=sflag, size = 0x8, scoped, tag = 'scoped memory for tpu_custom_call.1']
    #allocation5 [shape = 'u8[1048576]{0}', space=vmem, size = 0x100000, scoped, tag = 'output window, operand 0']
    %6 = vsyncpa [#allocation3], 0
    %s7 = scalar_lea.sflag [#allocation3], 1
    %8 = vsyncpa %s7, 0
    %9 = vsyncpa [#allocation4], 0
    %s10 = scalar_lea.sflag [#allocation4], 1
    %11 = vsyncpa %s10, 0
    loop: start=0, step=1, limit=6
    $region2: #{tpu_custom_call.1} parent=1 // loop_pre_header
      _
    $region3: #{tpu_custom_call.1} parent=1 // loop_header
      %s13 = sphi 0, %s17
      %p14 = scmp.ge.s32.totalorder %s13, 6
      %s23 = sphi 0, %s25
      %s26 = sphi 0, %s23
      %s27 = sphi 0, %s26
      %s43 = sphi 0, %s27
      %s49 = sphi 0, %s51
      %s52 = sphi 0, %s49
      %s53 = sphi 0, %s52
      %s69 = sphi 0, %s53
    $region4: #{tpu_custom_call.1} parent=1 // loop_header_branch
      %16 = sbr.rel (%p14) target = $region8
    $region5: #{tpu_custom_call.1} parent=1 // loop_body
      %s18 = ssub.s32 %s13, 1
      %s19 = ssub.s32 %s13, 2
      %s20 = sadd.s32 %s13, 1
      %s21 = ssub.s32 %s13, %s20
      %p22 = scmp.eq.s32.totalorder %s21, 0
      %s24 = sadd.s32 %s23, 1
      %s25 = scalar_select %p22, %s23, %s24
      %p28 = pneg %p22
      %p29 = scmp.eq.s32.totalorder %s13, 3
      %p30 = por %p28, %p29
      %p31 = scmp.ne.s32.totalorder %s23, %s26
      %p32 = scmp.eq.s32.totalorder %s13, 0
      %p33 = por %p31, %p32
      %p34 = scmp.ne.s32.totalorder %s23, %s26
      %p35 = scmp.eq.s32.totalorder %s18, 3
      %p36 = por %p34, %p35
      %p37 = scmp.ne.s32.totalorder %s26, %s27
      %p38 = scmp.eq.s32.totalorder %s18, 0
      %p39 = por %p37, %p38
      %p40 = scmp.ne.s32.totalorder %s26, %s27
      %p41 = scmp.eq.s32.totalorder %s19, 3
      %p42 = por %p40, %p41
      %p44 = scmp.ne.s32.totalorder %s27, %s43
      %p45 = scmp.eq.s32.totalorder %s19, 0
      %p46 = por %p44, %p45
      %s47 = ssub.s32 %s13, %s20
      %p48 = scmp.eq.s32.totalorder %s47, 0
      %s50 = sadd.s32 %s49, 1
      %s51 = scalar_select %p48, %s49, %s50
      %p54 = pneg %p48
      %p55 = scmp.eq.s32.totalorder %s13, 3
      %p56 = por %p54, %p55
      %p57 = scmp.ne.s32.totalorder %s49, %s52
      %p58 = scmp.eq.s32.totalorder %s13, 0
      %p59 = por %p57, %p58
      %p60 = scmp.ne.s32.totalorder %s49, %s52
      %p61 = scmp.eq.s32.totalorder %s18, 3
      %p62 = por %p60, %p61
      %p63 = scmp.ne.s32.totalorder %s52, %s53
      %p64 = scmp.eq.s32.totalorder %s18, 0
      %p65 = por %p63, %p64
      %p66 = scmp.ne.s32.totalorder %s52, %s53
      %p67 = scmp.eq.s32.totalorder %s19, 3
      %p68 = por %p66, %p67
      %p70 = scmp.ne.s32.totalorder %s53, %s69
      %p71 = scmp.eq.s32.totalorder %s19, 0
      %p72 = por %p70, %p71
      %p73 = scmp.le.s32.totalorder 1, %s13
      %p74 = scmp.lt.s32.totalorder %s13, 5
      %p75 = pnand %p73, %p74
      %p76 = pneg %p75
      // Predicated region
      $region9: #{tpu_custom_call.1} parent=5 // pred_check
        _
      $region10: #{tpu_custom_call.1} parent=5 // pred_check_branch
        %78 = sbr.rel (%p75) target = $region12
      $region11: #{tpu_custom_call.1} parent=5 // pred_region
        %s79 = ssub.s32 %s13, 1
      $region12: #{tpu_custom_call.1} parent=5 // pred_fallthru
        _
      %p80 = scmp.lt.s32.totalorder %s13, 4
      // Predicated region
      $region13: #{tpu_custom_call.1} parent=5 // pred_check
        %p81 = pneg %p80
      $region14: #{tpu_custom_call.1} parent=5 // pred_check_branch
        %83 = sbr.rel (%p81) target = $region16
      $region15: #{tpu_custom_call.1} parent=5 // pred_region
        // Predicated region
        $region17: #{tpu_custom_call.1} parent=15 // pred_check
          %p84 = pneg %p33
        $region18: #{tpu_custom_call.1} parent=15 // pred_check_branch
          %86 = sbr.rel (%p84) target = $region20
        $region19: #{tpu_custom_call.1} parent=15 // pred_region
          %s87 = sand.u32 %s23, 1
          %s88 = scalar_lea.sflag [#allocation3], %s87
          %s89 = sand.u32 %s23, 1
          %s90 = smul.addr %s89, 1024
          %s91 = scalar_lea.vmem [#allocation2], %s90
          %s92 = smul.u32 2, %s13
          %s94 = ssub.s32 16384, 16384
          %95 = vsyncadd %s88, %s94
          %s96 = smul.addr %s92, 64
          %s97 = smul.addr %s96, 128
          %s98 = scalar_lea.hbm %s0, %s97
          %s99 = sshll.u32 %s91, 4
          %s100 = int_to_ptr.vmem [resolvable:$true] %s99
          %105 = dma.hbm_to_vmem [thread:$0]  %s98, 16384, %s100, %s88, 8192, 8192, 512
        $region20: #{tpu_custom_call.1} parent=15 // pred_fallthru
          _
      $region16: #{tpu_custom_call.1} parent=5 // pred_fallthru
        _
      %p106 = scmp.le.s32.totalorder 1, %s13
      %p107 = scmp.lt.s32.totalorder %s13, 5
      %p108 = pnand %p106, %p107
      %p109 = pneg %p108
      // Predicated region
      $region21: #{tpu_custom_call.1} parent=5 // pred_check
        _
      $region22: #{tpu_custom_call.1} parent=5 // pred_check_branch
        %111 = sbr.rel (%p108) target = $region24
      $region23: #{tpu_custom_call.1} parent=5 // pred_region
        %s112 = ssub.s32 %s13, 1
        %s113 = sand.u32 %s26, 1
        %s114 = scalar_lea.sflag [#allocation3], %s113
        %s115 = sand.u32 %s26, 1
        %s116 = smul.addr %s115, 1024
        %s117 = scalar_lea.vmem [#allocation2], %s116
        // Predicated region
        $region25: #{tpu_custom_call.1} parent=23 // pred_check
          %p118 = pneg %p39
        $region26: #{tpu_custom_call.1} parent=23 // pred_check_branch
          %120 = sbr.rel (%p118) target = $region28
        $region27: #{tpu_custom_call.1} parent=23 // pred_region
          %121 = dma.done %s114, 16384
        $region28: #{tpu_custom_call.1} parent=23 // pred_fallthru
          _
        %s122 = sand.u32 %s26, 1
        %s123 = scalar_lea.sflag [#allocation3], %s122
        %s124 = sand.u32 %s26, 1
        %s125 = smul.addr %s124, 1024
        %s126 = scalar_lea.vmem [#allocation2], %s125
        %p127 = pneg %p39
        %p128 = pneg %p36
        %p129 = pneg %p65
        %p130 = pneg %p62
        %s131 = sand.u32 %s52, 1
        %s132 = scalar_lea.sflag [#allocation4], %s131
        %s133 = sand.u32 %s52, 1
        %s134 = smul.addr %s133, 1024
        %s135 = scalar_lea.vmem [#allocation5], %s134
        %s136 = smul.u32 2, %s18
        %s137 = smul.u32 2, %s18
        %v138 = vld [vmem:[%s117] sm:$0xff]
        %v139 = vld [vmem:[%s117 + $0x8] sm:$0xff]
        %v140 = vld [vmem:[%s117 + $0x10] sm:$0xff]
        %v141 = vld [vmem:[%s117 + $0x18] sm:$0xff]
        %v142 = vld [vmem:[%s117 + $0x20] sm:$0xff]
        %v143 = vld [vmem:[%s117 + $0x28] sm:$0xff]
        %v144 = vld [vmem:[%s117 + $0x30] sm:$0xff]
        %v145 = vld [vmem:[%s117 + $0x38] sm:$0xff]
        %v146 = vld [vmem:[%s117 + $0x40] sm:$0xff]
        %v147 = vld [vmem:[%s117 + $0x48] sm:$0xff]
        %v148 = vld [vmem:[%s117 + $0x50] sm:$0xff]
        %v149 = vld [vmem:[%s117 + $0x58] sm:$0xff]
        %v150 = vld [vmem:[%s117 + $0x60] sm:$0xff]
        %v151 = vld [vmem:[%s117 + $0x68] sm:$0xff]
        %v152 = vld [vmem:[%s117 + $0x70] sm:$0xff]
        %v153 = vld [vmem:[%s117 + $0x78] sm:$0xff]
        %v154 = vld [vmem:[%s117 + $0x80] sm:$0xff]
        %v155 = vld [vmem:[%s117 + $0x88] sm:$0xff]
        %v156 = vld [vmem:[%s117 + $0x90] sm:$0xff]
        %v157 = vld [vmem:[%s117 + $0x98] sm:$0xff]
        %v158 = vld [vmem:[%s117 + $0xa0] sm:$0xff]
        %v159 = vld [vmem:[%s117 + $0xa8] sm:$0xff]
        %v160 = vld [vmem:[%s117 + $0xb0] sm:$0xff]
        %v161 = vld [vmem:[%s117 + $0xb8] sm:$0xff]
        %v162 = vld [vmem:[%s117 + $0xc0] sm:$0xff]
        %v163 = vld [vmem:[%s117 + $0xc8] sm:$0xff]
        %v164 = vld [vmem:[%s117 + $0xd0] sm:$0xff]
        %v165 = vld [vmem:[%s117 + $0xd8] sm:$0xff]
        %v166 = vld [vmem:[%s117 + $0xe0] sm:$0xff]
        %v167 = vld [vmem:[%s117 + $0xe8] sm:$0xff]
        %v168 = vld [vmem:[%s117 + $0xf0] sm:$0xff]
        %v169 = vld [vmem:[%s117 + $0xf8] sm:$0xff]
        %v170 = vld [vmem:[%s117 + $0x100] sm:$0xff]
        %v171 = vld [vmem:[%s117 + $0x108] sm:$0xff]
        %v172 = vld [vmem:[%s117 + $0x110] sm:$0xff]
        %v173 = vld [vmem:[%s117 + $0x118] sm:$0xff]
        %v174 = vld [vmem:[%s117 + $0x120] sm:$0xff]
        %v175 = vld [vmem:[%s117 + $0x128] sm:$0xff]
        %v176 = vld [vmem:[%s117 + $0x130] sm:$0xff]
        %v177 = vld [vmem:[%s117 + $0x138] sm:$0xff]
        %v178 = vld [vmem:[%s117 + $0x140] sm:$0xff]
        %v179 = vld [vmem:[%s117 + $0x148] sm:$0xff]
        %v180 = vld [vmem:[%s117 + $0x150] sm:$0xff]
        %v181 = vld [vmem:[%s117 + $0x158] sm:$0xff]
        %v182 = vld [vmem:[%s117 + $0x160] sm:$0xff]
        %v183 = vld [vmem:[%s117 + $0x168] sm:$0xff]
        %v184 = vld [vmem:[%s117 + $0x170] sm:$0xff]
        %v185 = vld [vmem:[%s117 + $0x178] sm:$0xff]
        %v186 = vld [vmem:[%s117 + $0x180] sm:$0xff]
        %v187 = vld [vmem:[%s117 + $0x188] sm:$0xff]
        %v188 = vld [vmem:[%s117 + $0x190] sm:$0xff]
        %v189 = vld [vmem:[%s117 + $0x198] sm:$0xff]
        %v190 = vld [vmem:[%s117 + $0x1a0] sm:$0xff]
        %v191 = vld [vmem:[%s117 + $0x1a8] sm:$0xff]
        %v192 = vld [vmem:[%s117 + $0x1b0] sm:$0xff]
        %v193 = vld [vmem:[%s117 + $0x1b8] sm:$0xff]
        %v194 = vld [vmem:[%s117 + $0x1c0] sm:$0xff]
        %v195 = vld [vmem:[%s117 + $0x1c8] sm:$0xff]
        %v196 = vld [vmem:[%s117 + $0x1d0] sm:$0xff]
        %v197 = vld [vmem:[%s117 + $0x1d8] sm:$0xff]
        %v198 = vld [vmem:[%s117 + $0x1e0] sm:$0xff]
        %v199 = vld [vmem:[%s117 + $0x1e8] sm:$0xff]
        %v200 = vld [vmem:[%s117 + $0x1f0] sm:$0xff]
        %v201 = vld [vmem:[%s117 + $0x1f8] sm:$0xff]
        %v202 = vld [vmem:[%s117 + $0x200] sm:$0xff]
        %v203 = vld [vmem:[%s117 + $0x208] sm:$0xff]
        %v204 = vld [vmem:[%s117 + $0x210] sm:$0xff]
        %v205 = vld [vmem:[%s117 + $0x218] sm:$0xff]
        %v206 = vld [vmem:[%s117 + $0x220] sm:$0xff]
        %v207 = vld [vmem:[%s117 + $0x228] sm:$0xff]
        %v208 = vld [vmem:[%s117 + $0x230] sm:$0xff]
        %v209 = vld [vmem:[%s117 + $0x238] sm:$0xff]
        %v210 = vld [vmem:[%s117 + $0x240] sm:$0xff]
        %v211 = vld [vmem:[%s117 + $0x248] sm:$0xff]
        %v212 = vld [vmem:[%s117 + $0x250] sm:$0xff]
        %v213 = vld [vmem:[%s117 + $0x258] sm:$0xff]
        %v214 = vld [vmem:[%s117 + $0x260] sm:$0xff]
        %v215 = vld [vmem:[%s117 + $0x268] sm:$0xff]
        %v216 = vld [vmem:[%s117 + $0x270] sm:$0xff]
        %v217 = vld [vmem:[%s117 + $0x278] sm:$0xff]
        %v218 = vld [vmem:[%s117 + $0x280] sm:$0xff]
        %v219 = vld [vmem:[%s117 + $0x288] sm:$0xff]
        %v220 = vld [vmem:[%s117 + $0x290] sm:$0xff]
        %v221 = vld [vmem:[%s117 + $0x298] sm:$0xff]
        %v222 = vld [vmem:[%s117 + $0x2a0] sm:$0xff]
        %v223 = vld [vmem:[%s117 + $0x2a8] sm:$0xff]
        %v224 = vld [vmem:[%s117 + $0x2b0] sm:$0xff]
        %v225 = vld [vmem:[%s117 + $0x2b8] sm:$0xff]
        %v226 = vld [vmem:[%s117 + $0x2c0] sm:$0xff]
        %v227 = vld [vmem:[%s117 + $0x2c8] sm:$0xff]
        %v228 = vld [vmem:[%s117 + $0x2d0] sm:$0xff]
        %v229 = vld [vmem:[%s117 + $0x2d8] sm:$0xff]
        %v230 = vld [vmem:[%s117 + $0x2e0] sm:$0xff]
        %v231 = vld [vmem:[%s117 + $0x2e8] sm:$0xff]
        %v232 = vld [vmem:[%s117 + $0x2f0] sm:$0xff]
        %v233 = vld [vmem:[%s117 + $0x2f8] sm:$0xff]
        %v234 = vld [vmem:[%s117 + $0x300] sm:$0xff]
        %v235 = vld [vmem:[%s117 + $0x308] sm:$0xff]
        %v236 = vld [vmem:[%s117 + $0x310] sm:$0xff]
        %v237 = vld [vmem:[%s117 + $0x318] sm:$0xff]
        %v238 = vld [vmem:[%s117 + $0x320] sm:$0xff]
        %v239 = vld [vmem:[%s117 + $0x328] sm:$0xff]
        %v240 = vld [vmem:[%s117 + $0x330] sm:$0xff]
        %v241 = vld [vmem:[%s117 + $0x338] sm:$0xff]
        %v242 = vld [vmem:[%s117 + $0x340] sm:$0xff]
        %v243 = vld [vmem:[%s117 + $0x348] sm:$0xff]
        %v244 = vld [vmem:[%s117 + $0x350] sm:$0xff]
        %v245 = vld [vmem:[%s117 + $0x358] sm:$0xff]
        %v246 = vld [vmem:[%s117 + $0x360] sm:$0xff]
        %v247 = vld [vmem:[%s117 + $0x368] sm:$0xff]
        %v248 = vld [vmem:[%s117 + $0x370] sm:$0xff]
        %v249 = vld [vmem:[%s117 + $0x378] sm:$0xff]
        %v250 = vld [vmem:[%s117 + $0x380] sm:$0xff]
        %v251 = vld [vmem:[%s117 + $0x388] sm:$0xff]
        %v252 = vld [vmem:[%s117 + $0x390] sm:$0xff]
        %v253 = vld [vmem:[%s117 + $0x398] sm:$0xff]
        %v254 = vld [vmem:[%s117 + $0x3a0] sm:$0xff]
        %v255 = vld [vmem:[%s117 + $0x3a8] sm:$0xff]
        %v256 = vld [vmem:[%s117 + $0x3b0] sm:$0xff]
        %v257 = vld [vmem:[%s117 + $0x3b8] sm:$0xff]
        %v258 = vld [vmem:[%s117 + $0x3c0] sm:$0xff]
        %v259 = vld [vmem:[%s117 + $0x3c8] sm:$0xff]
        %v260 = vld [vmem:[%s117 + $0x3d0] sm:$0xff]
        %v261 = vld [vmem:[%s117 + $0x3d8] sm:$0xff]
        %v262 = vld [vmem:[%s117 + $0x3e0] sm:$0xff]
        %v263 = vld [vmem:[%s117 + $0x3e8] sm:$0xff]
        %v264 = vld [vmem:[%s117 + $0x3f0] sm:$0xff]
        %v265 = vld [vmem:[%s117 + $0x3f8] sm:$0xff]
        %266 = vst [vmem:[%s135] sm:$0xff] %v138
        %267 = vst [vmem:[%s135 + $0x8] sm:$0xff] %v139
        %268 = vst [vmem:[%s135 + $0x10] sm:$0xff] %v140
        %269 = vst [vmem:[%s135 + $0x18] sm:$0xff] %v141
        %270 = vst [vmem:[%s135 + $0x20] sm:$0xff] %v142
        %271 = vst [vmem:[%s135 + $0x28] sm:$0xff] %v143
        %272 = vst [vmem:[%s135 + $0x30] sm:$0xff] %v144
        %273 = vst [vmem:[%s135 + $0x38] sm:$0xff] %v145
        %274 = vst [vmem:[%s135 + $0x40] sm:$0xff] %v146
        %275 = vst [vmem:[%s135 + $0x48] sm:$0xff] %v147
        %276 = vst [vmem:[%s135 + $0x50] sm:$0xff] %v148
        %277 = vst [vmem:[%s135 + $0x58] sm:$0xff] %v149
        %278 = vst [vmem:[%s135 + $0x60] sm:$0xff] %v150
        %279 = vst [vmem:[%s135 + $0x68] sm:$0xff] %v151
        %280 = vst [vmem:[%s135 + $0x70] sm:$0xff] %v152
        %281 = vst [vmem:[%s135 + $0x78] sm:$0xff] %v153
        %282 = vst [vmem:[%s135 + $0x80] sm:$0xff] %v154
        %283 = vst [vmem:[%s135 + $0x88] sm:$0xff] %v155
        %284 = vst [vmem:[%s135 + $0x90] sm:$0xff] %v156
        %285 = vst [vmem:[%s135 + $0x98] sm:$0xff] %v157
        %286 = vst [vmem:[%s135 + $0xa0] sm:$0xff] %v158
        %287 = vst [vmem:[%s135 + $0xa8] sm:$0xff] %v159
        %288 = vst [vmem:[%s135 + $0xb0] sm:$0xff] %v160
        %289 = vst [vmem:[%s135 + $0xb8] sm:$0xff] %v161
        %290 = vst [vmem:[%s135 + $0xc0] sm:$0xff] %v162
        %291 = vst [vmem:[%s135 + $0xc8] sm:$0xff] %v163
        %292 = vst [vmem:[%s135 + $0xd0] sm:$0xff] %v164
        %293 = vst [vmem:[%s135 + $0xd8] sm:$0xff] %v165
        %294 = vst [vmem:[%s135 + $0xe0] sm:$0xff] %v166
        %295 = vst [vmem:[%s135 + $0xe8] sm:$0xff] %v167
        %296 = vst [vmem:[%s135 + $0xf0] sm:$0xff] %v168
        %297 = vst [vmem:[%s135 + $0xf8] sm:$0xff] %v169
        %298 = vst [vmem:[%s135 + $0x100] sm:$0xff] %v170
        %299 = vst [vmem:[%s135 + $0x108] sm:$0xff] %v171
        %300 = vst [vmem:[%s135 + $0x110] sm:$0xff] %v172
        %301 = vst [vmem:[%s135 + $0x118] sm:$0xff] %v173
        %302 = vst [vmem:[%s135 + $0x120] sm:$0xff] %v174
        %303 = vst [vmem:[%s135 + $0x128] sm:$0xff] %v175
        %304 = vst [vmem:[%s135 + $0x130] sm:$0xff] %v176
        %305 = vst [vmem:[%s135 + $0x138] sm:$0xff] %v177
        %306 = vst [vmem:[%s135 + $0x140] sm:$0xff] %v178
        %307 = vst [vmem:[%s135 + $0x148] sm:$0xff] %v179
        %308 = vst [vmem:[%s135 + $0x150] sm:$0xff] %v180
        %309 = vst [vmem:[%s135 + $0x158] sm:$0xff] %v181
        %310 = vst [vmem:[%s135 + $0x160] sm:$0xff] %v182
        %311 = vst [vmem:[%s135 + $0x168] sm:$0xff] %v183
        %312 = vst [vmem:[%s135 + $0x170] sm:$0xff] %v184
        %313 = vst [vmem:[%s135 + $0x178] sm:$0xff] %v185
        %314 = vst [vmem:[%s135 + $0x180] sm:$0xff] %v186
        %315 = vst [vmem:[%s135 + $0x188] sm:$0xff] %v187
        %316 = vst [vmem:[%s135 + $0x190] sm:$0xff] %v188
        %317 = vst [vmem:[%s135 + $0x198] sm:$0xff] %v189
        %318 = vst [vmem:[%s135 + $0x1a0] sm:$0xff] %v190
        %319 = vst [vmem:[%s135 + $0x1a8] sm:$0xff] %v191
        %320 = vst [vmem:[%s135 + $0x1b0] sm:$0xff] %v192
        %321 = vst [vmem:[%s135 + $0x1b8] sm:$0xff] %v193
        %322 = vst [vmem:[%s135 + $0x1c0] sm:$0xff] %v194
        %323 = vst [vmem:[%s135 + $0x1c8] sm:$0xff] %v195
        %324 = vst [vmem:[%s135 + $0x1d0] sm:$0xff] %v196
        %325 = vst [vmem:[%s135 + $0x1d8] sm:$0xff] %v197
        %326 = vst [vmem:[%s135 + $0x1e0] sm:$0xff] %v198
        %327 = vst [vmem:[%s135 + $0x1e8] sm:$0xff] %v199
        %328 = vst [vmem:[%s135 + $0x1f0] sm:$0xff] %v200
        %329 = vst [vmem:[%s135 + $0x1f8] sm:$0xff] %v201
        %330 = vst [vmem:[%s135 + $0x200] sm:$0xff] %v202
        %331 = vst [vmem:[%s135 + $0x208] sm:$0xff] %v203
        %332 = vst [vmem:[%s135 + $0x210] sm:$0xff] %v204
        %333 = vst [vmem:[%s135 + $0x218] sm:$0xff] %v205
        %334 = vst [vmem:[%s135 + $0x220] sm:$0xff] %v206
        %335 = vst [vmem:[%s135 + $0x228] sm:$0xff] %v207
        %336 = vst [vmem:[%s135 + $0x230] sm:$0xff] %v208
        %337 = vst [vmem:[%s135 + $0x238] sm:$0xff] %v209
        %338 = vst [vmem:[%s135 + $0x240] sm:$0xff] %v210
        %339 = vst [vmem:[%s135 + $0x248] sm:$0xff] %v211
        %340 = vst [vmem:[%s135 + $0x250] sm:$0xff] %v212
        %341 = vst [vmem:[%s135 + $0x258] sm:$0xff] %v213
        %342 = vst [vmem:[%s135 + $0x260] sm:$0xff] %v214
        %343 = vst [vmem:[%s135 + $0x268] sm:$0xff] %v215
        %344 = vst [vmem:[%s135 + $0x270] sm:$0xff] %v216
        %345 = vst [vmem:[%s135 + $0x278] sm:$0xff] %v217
        %346 = vst [vmem:[%s135 + $0x280] sm:$0xff] %v218
        %347 = vst [vmem:[%s135 + $0x288] sm:$0xff] %v219
        %348 = vst [vmem:[%s135 + $0x290] sm:$0xff] %v220
        %349 = vst [vmem:[%s135 + $0x298] sm:$0xff] %v221
        %350 = vst [vmem:[%s135 + $0x2a0] sm:$0xff] %v222
        %351 = vst [vmem:[%s135 + $0x2a8] sm:$0xff] %v223
        %352 = vst [vmem:[%s135 + $0x2b0] sm:$0xff] %v224
        %353 = vst [vmem:[%s135 + $0x2b8] sm:$0xff] %v225
        %354 = vst [vmem:[%s135 + $0x2c0] sm:$0xff] %v226
        %355 = vst [vmem:[%s135 + $0x2c8] sm:$0xff] %v227
        %356 = vst [vmem:[%s135 + $0x2d0] sm:$0xff] %v228
        %357 = vst [vmem:[%s135 + $0x2d8] sm:$0xff] %v229
        %358 = vst [vmem:[%s135 + $0x2e0] sm:$0xff] %v230
        %359 = vst [vmem:[%s135 + $0x2e8] sm:$0xff] %v231
        %360 = vst [vmem:[%s135 + $0x2f0] sm:$0xff] %v232
        %361 = vst [vmem:[%s135 + $0x2f8] sm:$0xff] %v233
        %362 = vst [vmem:[%s135 + $0x300] sm:$0xff] %v234
        %363 = vst [vmem:[%s135 + $0x308] sm:$0xff] %v235
        %364 = vst [vmem:[%s135 + $0x310] sm:$0xff] %v236
        %365 = vst [vmem:[%s135 + $0x318] sm:$0xff] %v237
        %366 = vst [vmem:[%s135 + $0x320] sm:$0xff] %v238
        %367 = vst [vmem:[%s135 + $0x328] sm:$0xff] %v239
        %368 = vst [vmem:[%s135 + $0x330] sm:$0xff] %v240
        %369 = vst [vmem:[%s135 + $0x338] sm:$0xff] %v241
        %370 = vst [vmem:[%s135 + $0x340] sm:$0xff] %v242
        %371 = vst [vmem:[%s135 + $0x348] sm:$0xff] %v243
        %372 = vst [vmem:[%s135 + $0x350] sm:$0xff] %v244
        %373 = vst [vmem:[%s135 + $0x358] sm:$0xff] %v245
        %374 = vst [vmem:[%s135 + $0x360] sm:$0xff] %v246
        %375 = vst [vmem:[%s135 + $0x368] sm:$0xff] %v247
        %376 = vst [vmem:[%s135 + $0x370] sm:$0xff] %v248
        %377 = vst [vmem:[%s135 + $0x378] sm:$0xff] %v249
        %378 = vst [vmem:[%s135 + $0x380] sm:$0xff] %v250
        %379 = vst [vmem:[%s135 + $0x388] sm:$0xff] %v251
        %380 = vst [vmem:[%s135 + $0x390] sm:$0xff] %v252
        %381 = vst [vmem:[%s135 + $0x398] sm:$0xff] %v253
        %382 = vst [vmem:[%s135 + $0x3a0] sm:$0xff] %v254
        %383 = vst [vmem:[%s135 + $0x3a8] sm:$0xff] %v255
        %384 = vst [vmem:[%s135 + $0x3b0] sm:$0xff] %v256
        %385 = vst [vmem:[%s135 + $0x3b8] sm:$0xff] %v257
        %386 = vst [vmem:[%s135 + $0x3c0] sm:$0xff] %v258
        %387 = vst [vmem:[%s135 + $0x3c8] sm:$0xff] %v259
        %388 = vst [vmem:[%s135 + $0x3d0] sm:$0xff] %v260
        %389 = vst [vmem:[%s135 + $0x3d8] sm:$0xff] %v261
        %390 = vst [vmem:[%s135 + $0x3e0] sm:$0xff] %v262
        %391 = vst [vmem:[%s135 + $0x3e8] sm:$0xff] %v263
        %392 = vst [vmem:[%s135 + $0x3f0] sm:$0xff] %v264
        %393 = vst [vmem:[%s135 + $0x3f8] sm:$0xff] %v265
        %s394 = sand.u32 %s52, 1
        %s395 = scalar_lea.sflag [#allocation4], %s394
        %s396 = sand.u32 %s52, 1
        %s397 = smul.addr %s396, 1024
        %s398 = scalar_lea.vmem [#allocation5], %s397
        // Predicated region
        $region29: #{tpu_custom_call.1} parent=23 // pred_check
          %p399 = pneg %p62
        $region30: #{tpu_custom_call.1} parent=23 // pred_check_branch
          %401 = sbr.rel (%p399) target = $region32
        $region31: #{tpu_custom_call.1} parent=23 // pred_region
          %s402 = smul.u32 2, %s18
          %s404 = ssub.s32 16384, 16384
          %405 = vsyncadd %s395, %s404
          %s406 = smul.addr %s402, 64
          %s407 = smul.addr %s406, 128
          %s408 = scalar_lea.hbm %s1, %s407
          %s409 = sshll.u32 %s398, 4
          %s410 = int_to_ptr.vmem [resolvable:$true] %s409
          %415 = dma.vmem_to_hbm [thread:$0]  %s410, 16384, %s408, %s395, 8192, 8192, 512
        $region32: #{tpu_custom_call.1} parent=23 // pred_fallthru
          _
      $region24: #{tpu_custom_call.1} parent=5 // pred_fallthru
        _
      %p416 = scmp.le.s32.totalorder 2, %s13
      // Predicated region
      $region33: #{tpu_custom_call.1} parent=5 // pred_check
        %p417 = pneg %p416
      $region34: #{tpu_custom_call.1} parent=5 // pred_check_branch
        %419 = sbr.rel (%p417) target = $region36
      $region35: #{tpu_custom_call.1} parent=5 // pred_region
        %s420 = ssub.s32 %s13, 2
        // Predicated region
        $region37: #{tpu_custom_call.1} parent=35 // pred_check
          %p421 = pneg %p68
        $region38: #{tpu_custom_call.1} parent=35 // pred_check_branch
          %423 = sbr.rel (%p421) target = $region40
        $region39: #{tpu_custom_call.1} parent=35 // pred_region
          %s424 = sand.u32 %s53, 1
          %s425 = scalar_lea.sflag [#allocation4], %s424
          %s426 = sand.u32 %s53, 1
          %s427 = smul.addr %s426, 1024
          %s428 = scalar_lea.vmem [#allocation5], %s427
          %429 = dma.done %s425, 16384
        $region40: #{tpu_custom_call.1} parent=35 // pred_fallthru
          _
      $region36: #{tpu_custom_call.1} parent=5 // pred_fallthru
        _
    $region6: #{tpu_custom_call.1} parent=1 // loop_footer
      %s17 = sadd.s32 1, %s13
    $region7: #{tpu_custom_call.1} parent=1 // loop_footer_branch
      %12 = sbr.rel target = $region3
    $region8: #{tpu_custom_call.1} parent=1 // loop_exit
      _
    %430 = vsyncpa [#allocation3], 1
    %s431 = scalar_lea.sflag [#allocation3], 1
    %432 = vsyncpa %s431, 1
    %433 = vsyncpa [#allocation4], 1
    %s434 = scalar_lea.sflag [#allocation4], 1
    %435 = vsyncpa %s434, 1

</llo_original>
